<compile_context>
chip_gen: v7x
topology: tpu7x:2x2x1
jax: 0.10.0
libtpu: 0.0.40
codegen_flags: <defaults>
</compile_context>

<pallas_src>
import functools

import jax
import jax.numpy as jnp
from jax.experimental import pallas as pl
from jax.experimental.pallas import tpu as pltpu


def _round_up(x, m):
    return ((x + m - 1) // m) * m


def lqnet_kernel(x_ref, w1_ref, b1_ref, w2_ref, b2_ref, w3_ref, b3_ref, o_ref,
                 *, output_size):
    # Layer 1: Linear(input, hidden) + ReLU   (MXU, f32 accumulation)
    h1 = jnp.dot(x_ref[...], w1_ref[...], preferred_element_type=jnp.float32)
    h1 = jnp.maximum(h1 + b1_ref[...].astype(jnp.float32), 0.0)
    # Layer 2: Linear(hidden, hidden // 2) + ReLU
    h2 = jnp.dot(h1.astype(w2_ref.dtype), w2_ref[...],
                 preferred_element_type=jnp.float32)
    h2 = jnp.maximum(h2 + b2_ref[...].astype(jnp.float32), 0.0)
    # Layer 3: Linear(hidden // 2, out_pad); lane-dense in registers, but only
    # the first `output_size` lanes are stored (narrow HBM writeback).
    out = jnp.dot(h2.astype(w3_ref.dtype), w3_ref[...],
                  preferred_element_type=jnp.float32)
    out = out + b3_ref[...].astype(jnp.float32)
    o_ref[...] = out[:, :output_size].astype(o_ref.dtype)


def lqnet_forward(x, params, output_size, *, block_m=2048, min_tiles=2):
    """x: [B, input_size] (f32 or bf16); params: output of prepare_params()."""
    w1, b1, w2, b2, w3, b3 = params
    B, in_size = x.shape
    hid1 = w1.shape[1]
    hid2 = w2.shape[1]
    out_pad = w3.shape[1]

    # Batch tiling with minimal padding.  bf16 packs 16 rows per sublane pair,
    # f32 packs 8.  Keep >=2 tiles when the batch allows so v7x's two
    # TensorCores both get work (no effect on single-TC v5e/v6e).
    row_align = 16 if x.dtype == jnp.bfloat16 else 8
    n_tiles = pl.cdiv(B, block_m)
    if n_tiles < min_tiles and B >= min_tiles * row_align:
        n_tiles = min_tiles
    tm = _round_up(pl.cdiv(B, n_tiles), row_align)
    b_pad = n_tiles * tm
    if b_pad != B:
        x = jnp.pad(x, ((0, b_pad - B), (0, 0)))
    grid = (n_tiles,)

    # Honest traffic estimate: padded-x read + resident weights + narrow output.
    bytes_accessed = int(
        b_pad * in_size * x.dtype.itemsize
        + sum(int(p.size) * p.dtype.itemsize for p in params)
        + b_pad * output_size * 4
    )
    flops = int(2 * b_pad * (in_size * hid1 + hid1 * hid2 + hid2 * out_pad))

    kernel = functools.partial(lqnet_kernel, output_size=output_size)

    out = pl.pallas_call(
        kernel,
        out_shape=jax.ShapeDtypeStruct((b_pad, output_size), jnp.float32),
        grid_spec=pltpu.PrefetchScalarGridSpec(
            num_scalar_prefetch=0,
            grid=grid,
            in_specs=[
                # x batch tile: auto double-buffered HBM->VMEM pipelining.
                pl.BlockSpec((tm, in_size), lambda i: (i, 0)),
                # weights/biases: constant index_map -> fetched once, resident.
                pl.BlockSpec(w1.shape, lambda i: (0, 0)),
                pl.BlockSpec(b1.shape, lambda i: (0, 0)),
                pl.BlockSpec(w2.shape, lambda i: (0, 0)),
                pl.BlockSpec(b2.shape, lambda i: (0, 0)),
                pl.BlockSpec(w3.shape, lambda i: (0, 0)),
                pl.BlockSpec(b3.shape, lambda i: (0, 0)),
            ],
            # Narrow output block: last dim == full array dim, so (tm, 3) is
            # legal; a few masked stores per tile beat ~500 B/row of padding.
            out_specs=pl.BlockSpec((tm, output_size), lambda i: (i, 0)),
        ),
        compiler_params=pltpu.CompilerParams(
            dimension_semantics=("parallel",),  # v7x: batch tiles split over 2 TCs
            vmem_limit_bytes=32 * 1024 * 1024,  # ample headroom even for tm=4096
        ),
        cost_estimate=pl.CostEstimate(
            flops=flops, transcendentals=0, bytes_accessed=bytes_accessed),
    )(x, w1, b1, w2, b2, w3, b3)
    return out[:B]


def init_params(key, input_size, hidden_size, output_size=3):
    """PyTorch-style uniform(+/- 1/sqrt(fan_in)) init; weights stored [in, out]."""
    def linear(k, fan_in, fan_out):
        kw, kb = jax.random.split(k)
        bound = 1.0 / jnp.sqrt(jnp.float32(fan_in))
        w = jax.random.uniform(kw, (fan_in, fan_out), jnp.float32, -bound, bound)
        b = jax.random.uniform(kb, (1, fan_out), jnp.float32, -bound, bound)
        return w, b

    k1, k2, k3 = jax.random.split(key, 3)
    w1, b1 = linear(k1, input_size, hidden_size)
    w2, b2 = linear(k2, hidden_size, hidden_size // 2)
    w3, b3 = linear(k3, hidden_size // 2, output_size)
    return w1, b1, w2, b2, w3, b3


def prepare_params(raw_params, weight_dtype=jnp.float32):
    """Pad the last layer to 128 output lanes (lane-dense in-register compute;
    the kernel slices back to output_size at the store) and optionally cast
    weights to bf16 (biases stay f32; MXU accumulation is always f32)."""
    w1, b1, w2, b2, w3, b3 = raw_params
    out_size = w3.shape[1]
    out_pad = _round_up(out_size, 128)
    w3p = jnp.pad(w3, ((0, 0), (0, out_pad - out_size)))
    b3p = jnp.pad(b3, ((0, 0), (0, out_pad - out_size)))
    return (w1.astype(weight_dtype), b1,
            w2.astype(weight_dtype), b2,
            w3p.astype(weight_dtype), b3p)


def lqnet_reference(x, raw_params):
    w1, b1, w2, b2, w3, b3 = raw_params
    h1 = jnp.maximum(x @ w1 + b1, 0.0)
    h2 = jnp.maximum(h1 @ w2 + b2, 0.0)
    return h2 @ w3 + b3


if __name__ == "__main__":
    input_size = 16
    hidden_size = 32
    output_size = 3

    key = jax.random.PRNGKey(0)
    kx, kx2, kx3, kp = jax.random.split(key, 4)
    raw = init_params(kp, input_size, hidden_size, output_size)

    # --- f32 path, tiny batch (single grid step, no padding) ---
    x = jax.random.normal(kx, (8, input_size), jnp.float32)
    p32 = prepare_params(raw, jnp.float32)
    out32 = jax.block_until_ready(lqnet_forward(x, p32, output_size))
    ref = lqnet_reference(x, raw)
    assert out32.shape == (8, output_size)
    assert jnp.allclose(out32, ref, atol=1e-5, rtol=1e-5)

    # --- bf16 weights/x with f32 accumulation (2 tiles, 16-row alignment) ---
    xb = jax.random.normal(kx2, (64, input_size), jnp.float32)
    p16 = prepare_params(raw, jnp.bfloat16)
    out16 = jax.block_until_ready(
        lqnet_forward(xb.astype(jnp.bfloat16), p16, output_size))
    assert out16.shape == (64, output_size)
    assert jnp.allclose(out16, lqnet_reference(xb, raw), atol=1e-1, rtol=5e-2)

    # --- multi-tile, non-divisible batch: exercises grid, minimal padding,
    #     resident weights, narrow masked output stores ---
    xl = jax.random.normal(kx3, (1030, input_size), jnp.float32)
    outl = jax.block_until_ready(lqnet_forward(xl, p32, output_size, block_m=512))
    assert outl.shape == (1030, output_size)
    assert jnp.allclose(outl, lqnet_reference(xl, raw), atol=1e-5, rtol=1e-5)

    # --- default (large) tile path on the same batch ---
    outd = jax.block_until_ready(lqnet_forward(xl, p32, output_size))
    assert outd.shape == (1030, output_size)
    assert jnp.allclose(outd, lqnet_reference(xl, raw), atol=1e-5, rtol=1e-5)

    print("KERNEL_OK")
</pallas_src>

<mosaic_0001>
module attributes {stable_mosaic.version = 11 : i64} {
  func.func @lqnet_kernel(%arg0: i32, %arg1: memref<8x16xf32, #tpu.memory_space<vmem>>, %arg2: memref<16x32xf32, #tpu.memory_space<vmem>>, %arg3: memref<1x32xf32, #tpu.memory_space<vmem>>, %arg4: memref<32x16xf32, #tpu.memory_space<vmem>>, %arg5: memref<1x16xf32, #tpu.memory_space<vmem>>, %arg6: memref<16x128xf32, #tpu.memory_space<vmem>>, %arg7: memref<1x128xf32, #tpu.memory_space<vmem>>, %arg8: memref<8x3xf32, #tpu.memory_space<vmem>>) attributes {dimension_semantics = [#tpu.dimension_semantics<parallel>], iteration_bounds = array<i64: 1>, scalar_prefetch = 0 : i64, scratch_operands = 0 : i64, tpu.core_type = #tpu.core_type<tc>, window_params = [{transform_indices = @transform_0, window_bounds = array<i64: 8, 16>}, {pipeline_mode = #tpu.pipeline_mode<synchronous>, transform_indices = @transform_1, window_bounds = array<i64: 16, 32>}, {pipeline_mode = #tpu.pipeline_mode<synchronous>, transform_indices = @transform_2, window_bounds = array<i64: 1, 32>}, {pipeline_mode = #tpu.pipeline_mode<synchronous>, transform_indices = @transform_3, window_bounds = array<i64: 32, 16>}, {pipeline_mode = #tpu.pipeline_mode<synchronous>, transform_indices = @transform_4, window_bounds = array<i64: 1, 16>}, {pipeline_mode = #tpu.pipeline_mode<synchronous>, transform_indices = @transform_5, window_bounds = array<i64: 16, 128>}, {pipeline_mode = #tpu.pipeline_mode<synchronous>, transform_indices = @transform_6, window_bounds = array<i64: 1, 128>}, {transform_indices = @transform_7, window_bounds = array<i64: 8, 3>}]} {
    %c0 = arith.constant 0 : index
    %c0_0 = arith.constant 0 : index
    %0 = vector.load %arg1[%c0, %c0_0] : memref<8x16xf32, #tpu.memory_space<vmem>>, vector<8x16xf32>
    %c0_1 = arith.constant 0 : index
    %c0_2 = arith.constant 0 : index
    %1 = vector.load %arg2[%c0_1, %c0_2] : memref<16x32xf32, #tpu.memory_space<vmem>>, vector<16x32xf32>
    %cst = arith.constant dense<0.000000e+00> : vector<8x32xf32>
    %2 = tpu.matmul %0, %1, %cst {dimension_numbers = #tpu.dot_dimension_numbers<[1], [0], [0], [1], [0, 0, 1, 1], [], []>} : vector<8x16xf32>, vector<16x32xf32>, vector<8x32xf32> -> vector<8x32xf32>
    %c0_3 = arith.constant 0 : index
    %c0_4 = arith.constant 0 : index
    %3 = vector.load %arg3[%c0_3, %c0_4] : memref<1x32xf32, #tpu.memory_space<vmem>>, vector<1x32xf32>
    %4 = vector.broadcast %3 : vector<1x32xf32> to vector<8x32xf32>
    %5 = arith.addf %2, %4 : vector<8x32xf32>
    %cst_5 = arith.constant 0.000000e+00 : f32
    %6 = vector.broadcast %cst_5 : f32 to vector<8x32xf32>
    %7 = arith.maximumf %5, %6 : vector<8x32xf32>
    %c0_6 = arith.constant 0 : index
    %c0_7 = arith.constant 0 : index
    %8 = vector.load %arg4[%c0_6, %c0_7] : memref<32x16xf32, #tpu.memory_space<vmem>>, vector<32x16xf32>
    %cst_8 = arith.constant dense<0.000000e+00> : vector<8x16xf32>
    %9 = tpu.matmul %7, %8, %cst_8 {dimension_numbers = #tpu.dot_dimension_numbers<[1], [0], [0], [1], [0, 0, 1, 1], [], []>} : vector<8x32xf32>, vector<32x16xf32>, vector<8x16xf32> -> vector<8x16xf32>
    %c0_9 = arith.constant 0 : index
    %c0_10 = arith.constant 0 : index
    %10 = vector.load %arg5[%c0_9, %c0_10] : memref<1x16xf32, #tpu.memory_space<vmem>>, vector<1x16xf32>
    %11 = vector.broadcast %10 : vector<1x16xf32> to vector<8x16xf32>
    %12 = arith.addf %9, %11 : vector<8x16xf32>
    %cst_11 = arith.constant 0.000000e+00 : f32
    %13 = vector.broadcast %cst_11 : f32 to vector<8x16xf32>
    %14 = arith.maximumf %12, %13 : vector<8x16xf32>
    %c0_12 = arith.constant 0 : index
    %c0_13 = arith.constant 0 : index
    %15 = vector.load %arg6[%c0_12, %c0_13] : memref<16x128xf32, #tpu.memory_space<vmem>>, vector<16x128xf32>
    %cst_14 = arith.constant dense<0.000000e+00> : vector<8x128xf32>
    %16 = tpu.matmul %14, %15, %cst_14 {dimension_numbers = #tpu.dot_dimension_numbers<[1], [0], [0], [1], [0, 0, 1, 1], [], []>} : vector<8x16xf32>, vector<16x128xf32>, vector<8x128xf32> -> vector<8x128xf32>
    %c0_15 = arith.constant 0 : index
    %c0_16 = arith.constant 0 : index
    %17 = vector.load %arg7[%c0_15, %c0_16] : memref<1x128xf32, #tpu.memory_space<vmem>>, vector<1x128xf32>
    %18 = vector.broadcast %17 : vector<1x128xf32> to vector<8x128xf32>
    %19 = arith.addf %16, %18 : vector<8x128xf32>
    %20 = vector.extract_strided_slice %19 {offsets = [0, 0], sizes = [8, 3], strides = [1, 1]} : vector<8x128xf32> to vector<8x3xf32>
    %c0_17 = arith.constant 0 : index
    %c0_18 = arith.constant 0 : index
    %21 = vector.load %arg8[%c0_17, %c0_18] : memref<8x3xf32, #tpu.memory_space<vmem>>, vector<8x3xf32>
    tpu.vector_store %arg8[%c0_17, %c0_18], %20 {strides = array<i32>} : memref<8x3xf32, #tpu.memory_space<vmem>>, vector<8x3xf32>,
    return
  }
  func.func @transform_0(%arg0: i32) -> (i32, i32) {
    %c0_i32 = arith.constant 0 : i32
    %c0_i32_0 = arith.constant 0 : i32
    return %arg0, %c0_i32 : i32, i32
  }
  func.func @transform_1(%arg0: i32) -> (i32, i32) {
    %c0_i32 = arith.constant 0 : i32
    %c0_i32_0 = arith.constant 0 : i32
    %c0_i32_1 = arith.constant 0 : i32
    return %c0_i32, %c0_i32_0 : i32, i32
  }
  func.func @transform_2(%arg0: i32) -> (i32, i32) {
    %c0_i32 = arith.constant 0 : i32
    %c0_i32_0 = arith.constant 0 : i32
    %c0_i32_1 = arith.constant 0 : i32
    return %c0_i32, %c0_i32_0 : i32, i32
  }
  func.func @transform_3(%arg0: i32) -> (i32, i32) {
    %c0_i32 = arith.constant 0 : i32
    %c0_i32_0 = arith.constant 0 : i32
    %c0_i32_1 = arith.constant 0 : i32
    return %c0_i32, %c0_i32_0 : i32, i32
  }
  func.func @transform_4(%arg0: i32) -> (i32, i32) {
    %c0_i32 = arith.constant 0 : i32
    %c0_i32_0 = arith.constant 0 : i32
    %c0_i32_1 = arith.constant 0 : i32
    return %c0_i32, %c0_i32_0 : i32, i32
  }
  func.func @transform_5(%arg0: i32) -> (i32, i32) {
    %c0_i32 = arith.constant 0 : i32
    %c0_i32_0 = arith.constant 0 : i32
    %c0_i32_1 = arith.constant 0 : i32
    return %c0_i32, %c0_i32_0 : i32, i32
  }
  func.func @transform_6(%arg0: i32) -> (i32, i32) {
    %c0_i32 = arith.constant 0 : i32
    %c0_i32_0 = arith.constant 0 : i32
    %c0_i32_1 = arith.constant 0 : i32
    return %c0_i32, %c0_i32_0 : i32, i32
  }
  func.func @transform_7(%arg0: i32) -> (i32, i32) {
    %c0_i32 = arith.constant 0 : i32
    %c0_i32_0 = arith.constant 0 : i32
    return %arg0, %c0_i32 : i32, i32
  }
}

</mosaic_0001>

<llo_original>
// kernel: tpu_custom_call.1
$region0: #{tpu_custom_call.1}
  #allocation0 [shape = 'u32[]', space=smem, size = 0x4, offset = 0x4, fixed_abs, tag = 'smem constant byte address 0x4 - core index']
  #allocation1 [shape = 'u32[144,128]{1,0:T(1,128)}', space=vmem, size = 0x12000, scoped, tag = 'internal scratch']
  %s0 = inlined_call_operand.vmem [shape: f32[8,16], index: 0, kind: input, shape index: {}]
  %s1 = inlined_call_operand.vmem [shape: f32[16,32], index: 1, kind: input, shape index: {}]
  %s2 = inlined_call_operand.vmem [shape: f32[1,32], index: 2, kind: input, shape index: {}]
  %s3 = inlined_call_operand.vmem [shape: f32[32,16], index: 3, kind: input, shape index: {}]
  %s4 = inlined_call_operand.vmem [shape: f32[1,16], index: 4, kind: input, shape index: {}]
  %s5 = inlined_call_operand.vmem [shape: f32[16,128], index: 5, kind: input, shape index: {}]
  %s6 = inlined_call_operand.vmem [shape: f32[1,128], index: 6, kind: input, shape index: {}]
  %s7 = inlined_call_operand.vmem [shape: f32[8,3], index: 7, kind: output, shape index: {}]
  %s8 = sld [smem:[#allocation0]]
  $region38: #{tpu_custom_call.1} parent=0
    _
  %s10 = ssub.s32 1, %s8
  %s11 = scalar_select 0, %s10, %s8
  // Predicated region
  $region2: #{tpu_custom_call.1} parent=0 // pred_check
    _
  $region3: #{tpu_custom_call.1} parent=0 // pred_check_branch
    %13 = sbr.rel (0) target = $region5
  $region4: #{tpu_custom_call.1} parent=0 // pred_region
    _
  $region5: #{tpu_custom_call.1} parent=0 // pred_fallthru
    _
  // Predicated region
  $region6: #{tpu_custom_call.1} parent=0 // pred_check
    _
  $region7: #{tpu_custom_call.1} parent=0 // pred_check_branch
    %15 = sbr.rel (0) target = $region9
  $region8: #{tpu_custom_call.1} parent=0 // pred_region
    _
  $region9: #{tpu_custom_call.1} parent=0 // pred_fallthru
    _
  // Predicated region
  $region10: #{tpu_custom_call.1} parent=0 // pred_check
    _
  $region11: #{tpu_custom_call.1} parent=0 // pred_check_branch
    %17 = sbr.rel (0) target = $region13
  $region12: #{tpu_custom_call.1} parent=0 // pred_region
    _
  $region13: #{tpu_custom_call.1} parent=0 // pred_fallthru
    _
  // Predicated region
  $region14: #{tpu_custom_call.1} parent=0 // pred_check
    _
  $region15: #{tpu_custom_call.1} parent=0 // pred_check_branch
    %19 = sbr.rel (0) target = $region17
  $region16: #{tpu_custom_call.1} parent=0 // pred_region
    _
  $region17: #{tpu_custom_call.1} parent=0 // pred_fallthru
    _
  // Predicated region
  $region18: #{tpu_custom_call.1} parent=0 // pred_check
    _
  $region19: #{tpu_custom_call.1} parent=0 // pred_check_branch
    %21 = sbr.rel (0) target = $region21
  $region20: #{tpu_custom_call.1} parent=0 // pred_region
    _
  $region21: #{tpu_custom_call.1} parent=0 // pred_fallthru
    _
  // Predicated region
  $region22: #{tpu_custom_call.1} parent=0 // pred_check
    _
  $region23: #{tpu_custom_call.1} parent=0 // pred_check_branch
    %23 = sbr.rel (0) target = $region25
  $region24: #{tpu_custom_call.1} parent=0 // pred_region
    _
  $region25: #{tpu_custom_call.1} parent=0 // pred_fallthru
    _
  // Predicated region
  $region26: #{tpu_custom_call.1} parent=0 // pred_check
    _
  $region27: #{tpu_custom_call.1} parent=0 // pred_check_branch
    %25 = sbr.rel (0) target = $region29
  $region28: #{tpu_custom_call.1} parent=0 // pred_region
    _
  $region29: #{tpu_custom_call.1} parent=0 // pred_fallthru
    _
  %v26 = vld [vmem:[%s0] sm:$0xff]
  %v27 = vld [vmem:[%s1] sm:$0xff]
  %v28 = vld [vmem:[%s1 + $0x8] sm:$0xff]
  %v29 = vld [vmem:[%s2] sm:$0x1]
  %v31 = vlaneseq
  %v32 = vshrl.u32 %v31, 7
  %v33 = vsub.s32 0, %v32
  %v34 = vrot.slane %v29, %v33
  %vm36 = vcmask 130048
  %v38 = vsel %vm36, %v26, 0
  %40 = vmatprep.subr.mxu0 0.0
  %41 = vmatpush1.msra.mxu0 %v27
  %42 = vmatprep.subr.mxu0 0.0
  %43 = vmatpush1.msra.mxu0 %v28
  %44 = vmatprep.subr.mxu0 0.0
  %45 = vmatpush1.msra.mxu0 0.0
  %46 = vmatprep.subr.mxu0 0.0
  %47 = vmatpush1.msra.mxu0 0.0
  %48 = vmatprep.subr.mxu0 0.0
  %49 = vmatpush1.msra.mxu0 0.0
  %50 = vmatprep.subr.mxu0 0.0
  %51 = vmatpush1.msra.mxu0 0.0
  %52 = vmatprep.subr.mxu0 0.0
  %53 = vmatpush1.msra.mxu0 0.0
  %54 = vmatprep.subr.mxu0 0.0
  %55 = vmatpush1.msra.mxu0 0.0
  %56 = vmatprep.subr.mxu0 0.0
  %57 = vmatpush1.msra.mxu0 0.0
  %58 = vmatprep.subr.mxu0 0.0
  %59 = vmatpush1.msra.mxu0 0.0
  %60 = vmatprep.subr.mxu0 0.0
  %61 = vmatpush1.msra.mxu0 0.0
  %62 = vmatprep.subr.mxu0 0.0
  %63 = vmatpush1.msra.mxu0 0.0
  %64 = vmatprep.subr.mxu0 0.0
  %65 = vmatpush1.msra.mxu0 0.0
  %66 = vmatprep.subr.mxu0 0.0
  %67 = vmatpush1.msra.mxu0 0.0
  %68 = vmatprep.subr.mxu0 0.0
  %69 = vmatpush1.msra.mxu0 0.0
  %70 = vmatprep.subr.mxu0 0.0
  %71 = vmatpush1.msra.mxu0 0.0
  %72 = vmatprep.subr.mxu0 0.0
  %73 = vmatpush1.msra.mxu0 0.0
  %74 = vmatprep.subr.mxu0 0.0
  %75 = vmatpush1.msra.mxu0 0.0
  %76 = vmatprep.subr.mxu0 0.0
  %77 = vmatpush1.msra.mxu0 0.0
  %78 = vmatprep.subr.mxu0 0.0
  %79 = vmatpush1.msra.mxu0 0.0
  %80 = vmatprep.subr.mxu0 0.0
  %81 = vmatpush1.msra.mxu0 0.0
  %82 = vmatprep.subr.mxu0 0.0
  %83 = vmatpush1.msra.mxu0 0.0
  %84 = vmatprep.subr.mxu0 0.0
  %85 = vmatpush1.msra.mxu0 0.0
  %86 = vmatprep.subr.mxu0 0.0
  %87 = vmatpush1.msra.mxu0 0.0
  %88 = vmatprep.subr.mxu0 0.0
  %89 = vmatpush1.msra.mxu0 0.0
  %90 = vmatprep.subr.mxu0 0.0
  %91 = vmatpush1.msra.mxu0 0.0
  %92 = vmatprep.subr.mxu0 0.0
  %93 = vmatpush1.msra.mxu0 0.0
  %94 = vmatprep.subr.mxu0 0.0
  %95 = vmatpush1.msra.mxu0 0.0
  %96 = vmatprep.subr.mxu0 0.0
  %97 = vmatpush1.msra.mxu0 0.0
  %98 = vmatprep.subr.mxu0 0.0
  %99 = vmatpush1.msra.mxu0 0.0
  %100 = vmatprep.subr.mxu0 0.0
  %101 = vmatpush1.msra.mxu0 0.0
  %102 = vmatprep.subr.mxu0 0.0
  %103 = vmatpush1.msra.mxu0 0.0
  %104 = vmatprep.mubr.f32.mxu0 0.0
  %105 = vmatmul.mubr.f32.gmra.mrb[0].mxu0 %v38
  %v106 = vpop.f32.mrb[0].mxu0
  %v107 = vadd.f32 %v34, %v106
  %v108 = vpop.f32.mrb[0].mxu0
  %109 = vdwg.mxu0
  %v110 = vmax.f32 %v107, 0.0
  %v111 = vld [vmem:[%s3] sm:$0xff]
  %v112 = vld [vmem:[%s3 + $0x8] sm:$0xff]
  %v113 = vld [vmem:[%s3 + $0x10] sm:$0xff]
  %v114 = vld [vmem:[%s3 + $0x18] sm:$0xff]
  %v115 = vld [vmem:[%s4] sm:$0x1]
  %v117 = vlaneseq
  %v118 = vshrl.u32 %v117, 7
  %v119 = vsub.s32 0, %v118
  %v120 = vrot.slane %v115, %v119
  %vm122 = vcmask 261120
  %v124 = vsel %vm122, %v110, 0
  %126 = vmatprep.subr.mxu0 0.0
  %127 = vmatpush1.msra.mxu0 %v111
  %128 = vmatprep.subr.mxu0 0.0
  %129 = vmatpush1.msra.mxu0 %v112
  %130 = vmatprep.subr.mxu0 0.0
  %131 = vmatpush1.msra.mxu0 %v113
  %132 = vmatprep.subr.mxu0 0.0
  %133 = vmatpush1.msra.mxu0 %v114
  %134 = vmatprep.subr.mxu0 0.0
  %135 = vmatpush1.msra.mxu0 0.0
  %136 = vmatprep.subr.mxu0 0.0
  %137 = vmatpush1.msra.mxu0 0.0
  %138 = vmatprep.subr.mxu0 0.0
  %139 = vmatpush1.msra.mxu0 0.0
  %140 = vmatprep.subr.mxu0 0.0
  %141 = vmatpush1.msra.mxu0 0.0
  %142 = vmatprep.subr.mxu0 0.0
  %143 = vmatpush1.msra.mxu0 0.0
  %144 = vmatprep.subr.mxu0 0.0
  %145 = vmatpush1.msra.mxu0 0.0
  %146 = vmatprep.subr.mxu0 0.0
  %147 = vmatpush1.msra.mxu0 0.0
  %148 = vmatprep.subr.mxu0 0.0
  %149 = vmatpush1.msra.mxu0 0.0
  %150 = vmatprep.subr.mxu0 0.0
  %151 = vmatpush1.msra.mxu0 0.0
  %152 = vmatprep.subr.mxu0 0.0
  %153 = vmatpush1.msra.mxu0 0.0
  %154 = vmatprep.subr.mxu0 0.0
  %155 = vmatpush1.msra.mxu0 0.0
  %156 = vmatprep.subr.mxu0 0.0
  %157 = vmatpush1.msra.mxu0 0.0
  %158 = vmatprep.subr.mxu0 0.0
  %159 = vmatpush1.msra.mxu0 0.0
  %160 = vmatprep.subr.mxu0 0.0
  %161 = vmatpush1.msra.mxu0 0.0
  %162 = vmatprep.subr.mxu0 0.0
  %163 = vmatpush1.msra.mxu0 0.0
  %164 = vmatprep.subr.mxu0 0.0
  %165 = vmatpush1.msra.mxu0 0.0
  %166 = vmatprep.subr.mxu0 0.0
  %167 = vmatpush1.msra.mxu0 0.0
  %168 = vmatprep.subr.mxu0 0.0
  %169 = vmatpush1.msra.mxu0 0.0
  %170 = vmatprep.subr.mxu0 0.0
  %171 = vmatpush1.msra.mxu0 0.0
  %172 = vmatprep.subr.mxu0 0.0
  %173 = vmatpush1.msra.mxu0 0.0
  %174 = vmatprep.subr.mxu0 0.0
  %175 = vmatpush1.msra.mxu0 0.0
  %176 = vmatprep.subr.mxu0 0.0
  %177 = vmatpush1.msra.mxu0 0.0
  %178 = vmatprep.subr.mxu0 0.0
  %179 = vmatpush1.msra.mxu0 0.0
  %180 = vmatprep.subr.mxu0 0.0
  %181 = vmatpush1.msra.mxu0 0.0
  %182 = vmatprep.subr.mxu0 0.0
  %183 = vmatpush1.msra.mxu0 0.0
  %184 = vmatprep.subr.mxu0 0.0
  %185 = vmatpush1.msra.mxu0 0.0
  %186 = vmatprep.subr.mxu0 0.0
  %187 = vmatpush1.msra.mxu0 0.0
  %188 = vmatprep.subr.mxu0 0.0
  %189 = vmatpush1.msra.mxu0 0.0
  %190 = vmatprep.mubr.f32.mxu0 0.0
  %191 = vmatmul.mubr.f32.gmra.mrb[0].mxu0 %v124
  %v192 = vpop.f32.mrb[0].mxu0
  %v193 = vadd.f32 %v120, %v192
  %v194 = vpop.f32.mrb[0].mxu0
  %195 = vdwg.mxu0
  %v196 = vmax.f32 %v193, 0.0
  %v197 = vld [vmem:[%s5] sm:$0xff]
  %v198 = vld [vmem:[%s5 + $0x8] sm:$0xff]
  %v199 = vld [vmem:[%s6] sm:$0x1]
  %v201 = vlaneseq
  %v202 = vshrl.u32 %v201, 7
  %v203 = vsub.s32 0, %v202
  %v204 = vrot.slane %v199, %v203
  %v207 = vsel %vm36, %v196, 0
  %209 = vmatprep.subr.mxu0 0.0
  %210 = vmatpush1.msra.mxu0 %v197
  %211 = vmatprep.subr.mxu0 0.0
  %212 = vmatpush1.msra.mxu0 %v198
  %213 = vmatprep.subr.mxu0 0.0
  %214 = vmatpush1.msra.mxu0 0.0
  %215 = vmatprep.subr.mxu0 0.0
  %216 = vmatpush1.msra.mxu0 0.0
  %217 = vmatprep.subr.mxu0 0.0
  %218 = vmatpush1.msra.mxu0 0.0
  %219 = vmatprep.subr.mxu0 0.0
  %220 = vmatpush1.msra.mxu0 0.0
  %221 = vmatprep.subr.mxu0 0.0
  %222 = vmatpush1.msra.mxu0 0.0
  %223 = vmatprep.subr.mxu0 0.0
  %224 = vmatpush1.msra.mxu0 0.0
  %225 = vmatprep.subr.mxu0 0.0
  %226 = vmatpush1.msra.mxu0 0.0
  %227 = vmatprep.subr.mxu0 0.0
  %228 = vmatpush1.msra.mxu0 0.0
  %229 = vmatprep.subr.mxu0 0.0
  %230 = vmatpush1.msra.mxu0 0.0
  %231 = vmatprep.subr.mxu0 0.0
  %232 = vmatpush1.msra.mxu0 0.0
  %233 = vmatprep.subr.mxu0 0.0
  %234 = vmatpush1.msra.mxu0 0.0
  %235 = vmatprep.subr.mxu0 0.0
  %236 = vmatpush1.msra.mxu0 0.0
  %237 = vmatprep.subr.mxu0 0.0
  %238 = vmatpush1.msra.mxu0 0.0
  %239 = vmatprep.subr.mxu0 0.0
  %240 = vmatpush1.msra.mxu0 0.0
  %241 = vmatprep.subr.mxu0 0.0
  %242 = vmatpush1.msra.mxu0 0.0
  %243 = vmatprep.subr.mxu0 0.0
  %244 = vmatpush1.msra.mxu0 0.0
  %245 = vmatprep.subr.mxu0 0.0
  %246 = vmatpush1.msra.mxu0 0.0
  %247 = vmatprep.subr.mxu0 0.0
  %248 = vmatpush1.msra.mxu0 0.0
  %249 = vmatprep.subr.mxu0 0.0
  %250 = vmatpush1.msra.mxu0 0.0
  %251 = vmatprep.subr.mxu0 0.0
  %252 = vmatpush1.msra.mxu0 0.0
  %253 = vmatprep.subr.mxu0 0.0
  %254 = vmatpush1.msra.mxu0 0.0
  %255 = vmatprep.subr.mxu0 0.0
  %256 = vmatpush1.msra.mxu0 0.0
  %257 = vmatprep.subr.mxu0 0.0
  %258 = vmatpush1.msra.mxu0 0.0
  %259 = vmatprep.subr.mxu0 0.0
  %260 = vmatpush1.msra.mxu0 0.0
  %261 = vmatprep.subr.mxu0 0.0
  %262 = vmatpush1.msra.mxu0 0.0
  %263 = vmatprep.subr.mxu0 0.0
  %264 = vmatpush1.msra.mxu0 0.0
  %265 = vmatprep.subr.mxu0 0.0
  %266 = vmatpush1.msra.mxu0 0.0
  %267 = vmatprep.subr.mxu0 0.0
  %268 = vmatpush1.msra.mxu0 0.0
  %269 = vmatprep.subr.mxu0 0.0
  %270 = vmatpush1.msra.mxu0 0.0
  %271 = vmatprep.subr.mxu0 0.0
  %272 = vmatpush1.msra.mxu0 0.0
  %273 = vmatprep.mubr.f32.mxu0 0.0
  %274 = vmatmul.mubr.f32.gmra.mrb[0].mxu0 %v207
  %v275 = vpop.f32.mrb[0].mxu0
  %v276 = vadd.f32 %v204, %v275
  %v277 = vpop.f32.mrb[0].mxu0
  %278 = vdwg.mxu0
  %vm279 = vcmask 23552
  %280 = vst.msk [vmem:[%s7] sm:$0xff] %vm279, %v276
  // Predicated region
  $region30: #{tpu_custom_call.1} parent=0 // pred_check
    _
  $region31: #{tpu_custom_call.1} parent=0 // pred_check_branch
    %282 = sbr.rel (0) target = $region33
  $region32: #{tpu_custom_call.1} parent=0 // pred_region
    _
  $region33: #{tpu_custom_call.1} parent=0 // pred_fallthru
    _
  // Predicated region
  $region34: #{tpu_custom_call.1} parent=0 // pred_check
    _
  $region35: #{tpu_custom_call.1} parent=0 // pred_check_branch
    %284 = sbr.rel (0) target = $region37
  $region36: #{tpu_custom_call.1} parent=0 // pred_region
    _
  $region37: #{tpu_custom_call.1} parent=0 // pred_fallthru
    _

</llo_original>
